<compile_context>
chip_gen: v7x
topology: tpu7x:2x2x1
jax: 0.10.0
libtpu: 0.0.40
codegen_flags: <defaults>
</compile_context>

<pallas_src>
import jax
import jax.numpy as jnp
from jax.experimental import pallas as pl
from jax.experimental.pallas import tpu as pltpu

_LANES = 128           # vreg lane width (last dim must be lane-dense)
_SUBLANES = 8          # f32 sublanes per vreg (second-to-last dim alignment)
_MAX_BLOCK_ROWS = 512  # rows/block when tiling large N (512x128 f32 = 256 KiB)


def _linear_kernel(wb_ref, x_ref, o_ref):
    # wb_ref: (2,) f32 in SMEM -> [w, b]; x_ref / o_ref: (rows, 128) f32 VMEM.
    w = wb_ref[0]
    b = wb_ref[1]
    # Hot path: one VPU multiply-add broadcast from SMEM scalars (no MXU).
    o_ref[...] = x_ref[...] * w + b


@jax.jit
def manual_linear_regression(x, w, b):
    """y = x @ W^T + b for nn.Linear(1, 1). x: (N, 1) f32, w: (1, 1), b: (1,)."""
    n, d_in = x.shape
    d_out = w.shape[0]
    assert d_in == 1 and d_out == 1, "ManualLinearRegression is nn.Linear(1, 1)"

    # Lane-dense, sublane-aligned slab: (N, 1) -> (rows, 128), rows % 8 == 0,
    # so every load/store is a full unmasked (8, 128) vreg tile.
    rows = pl.cdiv(n, _LANES)
    rows_padded = pl.cdiv(rows, _SUBLANES) * _SUBLANES

    # Single packed SMEM scalar operand: [w, b].
    wb = jnp.concatenate(
        [w.reshape(-1).astype(jnp.float32), b.reshape(-1).astype(jnp.float32)]
    )

    if rows_padded <= _MAX_BLOCK_ROWS:
        # Small N: whole slab in VMEM, no grid, no pipeline double-buffering.
        padded = rows_padded * _LANES
        x_slab = jnp.pad(x.reshape(-1).astype(jnp.float32), (0, padded - n)).reshape(
            rows_padded, _LANES
        )
        y_slab = pl.pallas_call(
            _linear_kernel,
            out_shape=jax.ShapeDtypeStruct((rows_padded, _LANES), jnp.float32),
            in_specs=[
                pl.BlockSpec(memory_space=pltpu.MemorySpace.SMEM),
                pl.BlockSpec(memory_space=pltpu.MemorySpace.VMEM),
            ],
            out_specs=pl.BlockSpec(memory_space=pltpu.MemorySpace.VMEM),
        )(wb, x_slab)
    else:
        # Large N: tile over rows with a parallel grid axis (megacore-friendly,
        # small enough blocks for v7x's 64 MiB VMEM; ~HBM roofline on v6e/v5e).
        rows_full = pl.cdiv(rows_padded, _MAX_BLOCK_ROWS) * _MAX_BLOCK_ROWS
        padded = rows_full * _LANES
        x_slab = jnp.pad(x.reshape(-1).astype(jnp.float32), (0, padded - n)).reshape(
            rows_full, _LANES
        )
        y_slab = pl.pallas_call(
            _linear_kernel,
            out_shape=jax.ShapeDtypeStruct((rows_full, _LANES), jnp.float32),
            grid=(rows_full // _MAX_BLOCK_ROWS,),
            in_specs=[
                pl.BlockSpec(memory_space=pltpu.MemorySpace.SMEM),
                pl.BlockSpec((_MAX_BLOCK_ROWS, _LANES), lambda i: (i, 0)),
            ],
            out_specs=pl.BlockSpec((_MAX_BLOCK_ROWS, _LANES), lambda i: (i, 0)),
            compiler_params=pltpu.CompilerParams(
                dimension_semantics=("parallel",)
            ),
        )(wb, x_slab)

    # Undo the lane-dense packing (fused under the same jit).
    return y_slab.reshape(-1)[:n].reshape(n, d_out)


if __name__ == "__main__":
    key = jax.random.PRNGKey(0)
    kx, kw, kb = jax.random.split(key, 3)

    # Input mirrors np.random.rand(100, 1): uniform [0, 1), shape (100, 1).
    x = jax.random.uniform(kx, (100, 1), dtype=jnp.float32)

    # Deterministic nn.Linear(1, 1) init: uniform(-1/sqrt(in), 1/sqrt(in)) = U(-1, 1).
    w = jax.random.uniform(kw, (1, 1), dtype=jnp.float32, minval=-1.0, maxval=1.0)
    b = jax.random.uniform(kb, (1,), dtype=jnp.float32, minval=-1.0, maxval=1.0)

    y = jax.block_until_ready(manual_linear_regression(x, w, b))

    # Correctness check against plain-JAX reference of the same forward pass.
    y_ref = x @ w.T + b
    assert y.shape == (100, 1) and y.dtype == jnp.float32
    assert jnp.allclose(y, y_ref, atol=1e-5, rtol=1e-5)

    print("KERNEL_OK")
</pallas_src>

<mosaic_0001>
module attributes {stable_mosaic.version = 11 : i64} {
  func.func @_linear_kernel(%arg0: memref<2xf32, #tpu.memory_space<smem>>, %arg1: memref<8x128xf32, #tpu.memory_space<vmem>>, %arg2: memref<8x128xf32, #tpu.memory_space<vmem>>) attributes {dimension_semantics = [], scalar_prefetch = 0 : i64, scratch_operands = 0 : i64, tpu.core_type = #tpu.core_type<tc>} {
    %c0 = arith.constant 0 : index
    %0 = memref.load %arg0[%c0] : memref<2xf32, #tpu.memory_space<smem>>
    %c1 = arith.constant 1 : index
    %1 = memref.load %arg0[%c1] : memref<2xf32, #tpu.memory_space<smem>>
    %c0_0 = arith.constant 0 : index
    %c0_1 = arith.constant 0 : index
    %2 = vector.load %arg1[%c0_0, %c0_1] : memref<8x128xf32, #tpu.memory_space<vmem>>, vector<8x128xf32>
    %3 = vector.broadcast %0 : f32 to vector<8x128xf32>
    %4 = arith.mulf %2, %3 : vector<8x128xf32>
    %5 = vector.broadcast %1 : f32 to vector<8x128xf32>
    %6 = arith.addf %4, %5 : vector<8x128xf32>
    %c0_2 = arith.constant 0 : index
    %c0_3 = arith.constant 0 : index
    %7 = vector.load %arg2[%c0_2, %c0_3] : memref<8x128xf32, #tpu.memory_space<vmem>>, vector<8x128xf32>
    tpu.vector_store %arg2[%c0_2, %c0_3], %6 {strides = array<i32>} : memref<8x128xf32, #tpu.memory_space<vmem>>, vector<8x128xf32>,
    return
  }
}

</mosaic_0001>

<llo_original>
// kernel: manual_linear_regression.1
$region0: #{manual_linear_regression.1}
  #allocation0 [shape = 'u32[]', space=smem, size = 0x4, offset = 0x4, fixed_abs, tag = 'smem constant byte address 0x4 - core index']
  #allocation1 [shape = 'u32[144,128]{1,0:T(1,128)}', space=vmem, size = 0x12000, scoped, tag = 'internal scratch']
  %s0 = inlined_call_operand.vmem [shape: f32[2], index: 0, kind: input, shape index: {}]
  %s1 = inlined_call_operand.vmem [shape: f32[8,128], index: 1, kind: input, shape index: {}]
  %s2 = inlined_call_operand.vmem [shape: f32[8,128], index: 2, kind: output, shape index: {}]
  %s3 = sld [smem:[#allocation0]]
  $region22: #{manual_linear_regression.1} parent=0
    _
  %s5 = ssub.s32 1, %s3
  %s6 = scalar_select 0, %s5, %s3
  $region1: #{manual_linear_regression.1} parent=0
    #allocation2 [shape = 'u8[512]{0}', space=smem, size = 0x200, scoped, tag = 'input window, operand 0, single buffered']
    #allocation3 [shape = 's32[1]{0}', space=sflag, size = 0x4, scoped, tag = 'scoped memory for manual_linear_regression.1']
    %7 = vsyncpa [#allocation3], 0
    // Predicated region
    $region2: #{manual_linear_regression.1} parent=1 // pred_check
      _
    $region3: #{manual_linear_regression.1} parent=1 // pred_check_branch
      %9 = sbr.rel (0) target = $region5
    $region4: #{manual_linear_regression.1} parent=1 // pred_region
      %s11 = ssub.s32 16, 16
      %12 = vsyncadd [#allocation3], %s11
      %s14 = sshll.u32 %s0, 4
      %s15 = int_to_ptr.vmem [resolvable:$true] %s14
      %17 = dma.vmem_to_smem %s15, 16, [#allocation2], [#allocation3]
    $region5: #{manual_linear_regression.1} parent=1 // pred_fallthru
      _
    // Predicated region
    $region6: #{manual_linear_regression.1} parent=1 // pred_check
      _
    $region7: #{manual_linear_regression.1} parent=1 // pred_check_branch
      %19 = sbr.rel (0) target = $region9
    $region8: #{manual_linear_regression.1} parent=1 // pred_region
      _
    $region9: #{manual_linear_regression.1} parent=1 // pred_fallthru
      _
    // Predicated region
    $region10: #{manual_linear_regression.1} parent=1 // pred_check
      _
    $region11: #{manual_linear_regression.1} parent=1 // pred_check_branch
      %21 = sbr.rel (0) target = $region13
    $region12: #{manual_linear_regression.1} parent=1 // pred_region
      %22 = dma.done [#allocation3], 16
    $region13: #{manual_linear_regression.1} parent=1 // pred_fallthru
      _
    %23 = sfence
    %s24 = sld [smem:[#allocation2]]
    %s25 = sld [smem:[#allocation2 + $0x1]]
    %v26 = vld [vmem:[%s1] sm:$0xff]
    %v27 = vstv %s24
    %v28 = vmul.f32 %v26, %v27
    %v29 = vstv %s25
    %v30 = vadd.f32 %v28, %v29
    %31 = vst [vmem:[%s2] sm:$0xff] %v30
    // Predicated region
    $region14: #{manual_linear_regression.1} parent=1 // pred_check
      _
    $region15: #{manual_linear_regression.1} parent=1 // pred_check_branch
      %33 = sbr.rel (0) target = $region17
    $region16: #{manual_linear_regression.1} parent=1 // pred_region
      _
    $region17: #{manual_linear_regression.1} parent=1 // pred_fallthru
      _
    // Predicated region
    $region18: #{manual_linear_regression.1} parent=1 // pred_check
      _
    $region19: #{manual_linear_regression.1} parent=1 // pred_check_branch
      %35 = sbr.rel (0) target = $region21
    $region20: #{manual_linear_regression.1} parent=1 // pred_region
      _
    $region21: #{manual_linear_regression.1} parent=1 // pred_fallthru
      _
    %36 = vsyncpa [#allocation3], 1

</llo_original>
